<compile_context>
chip_gen: v5e
topology: v5e:2x2
jax: 0.10.0
libtpu: 0.0.40
codegen_flags: <defaults>
</compile_context>

<pallas_src>
import functools
import numpy as np
import jax
import jax.numpy as jnp
from jax.experimental import pallas as pl
from jax.experimental.pallas import tpu as pltpu

DTYPE = jnp.float32
WDTYPE = jnp.bfloat16


def _round_up(x, m):
    return ((x + m - 1) // m) * m


def _ceil_div(a, b):
    return -(-a // b)


# ---------------------------------------------------------------------------
# Pallas kernels
# ---------------------------------------------------------------------------

def _matmul_kernel(a_ref, b_ref, bias_ref, o_ref, *, act):
    """Tiled GEMM; bf16 MXU inputs, f32 accumulation directly into the output block."""
    k = pl.program_id(2)

    @pl.when(k == 0)
    def _():
        o_ref[...] = jnp.zeros_like(o_ref)

    o_ref[...] += jnp.dot(a_ref[...].astype(WDTYPE), b_ref[...],
                          preferred_element_type=jnp.float32)

    @pl.when(k == pl.num_programs(2) - 1)
    def _():
        y = o_ref[...] + bias_ref[...]
        if act == "relu":
            y = jnp.maximum(y, 0.0)
        elif act == "sigmoid":
            y = jax.nn.sigmoid(y)
        o_ref[...] = y.astype(o_ref.dtype)


def _conv3x3_kernel(x_hbm, w_ref, bias_ref, o_ref, abuf, sem, *, tm, shifts, act):
    """3x3 / stride-1 / pad-1 conv on a row-flattened padded input.

    Instead of im2col, a halo'd block of rows is DMA'd into VMEM and the 9 kernel taps are
    realised as 9 statically-shifted GEMMs accumulated in f32 (BN already folded into w/bias).
    """
    i = pl.program_id(0)
    rows = abuf.shape[0]
    start = pl.multiple_of(i * tm, 8)
    cp = pltpu.make_async_copy(x_hbm.at[pl.ds(start, rows)], abuf, sem)
    cp.start()
    cp.wait()

    acc = jnp.zeros(o_ref.shape, jnp.float32)
    for r, sh in enumerate(shifts):                      # 9 static offsets, unrolled
        acc += jnp.dot(abuf[sh:sh + tm, :].astype(WDTYPE), w_ref[r],
                       preferred_element_type=jnp.float32)
    y = acc + bias_ref[...]
    if act == "relu":
        y = jnp.maximum(y, 0.0)
    o_ref[...] = y.astype(o_ref.dtype)


def _gap_kernel(x_ref, o_ref, *, inv_hw):
    """(N, HW, C) -> (N, C) global average pool, reduction tiled over the HW axis."""
    k = pl.program_id(0)

    @pl.when(k == 0)
    def _():
        o_ref[...] = jnp.zeros_like(o_ref)

    o_ref[...] += jnp.sum(x_ref[...], axis=1)

    @pl.when(k == pl.num_programs(0) - 1)
    def _():
        o_ref[...] = o_ref[...] * inv_hw


def _se_fc_kernel(p_ref, w1_ref, b1_ref, w2_ref, b2_ref, o_ref):
    """Fused SE excitation: sigmoid(relu(p @ w1 + b1) @ w2 + b2)."""
    z = jnp.dot(p_ref[...].astype(WDTYPE), w1_ref[...],
                preferred_element_type=jnp.float32)
    z = jnp.maximum(z + b1_ref[...], 0.0)
    g = jnp.dot(z.astype(WDTYPE), w2_ref[...],
                preferred_element_type=jnp.float32)
    o_ref[...] = jax.nn.sigmoid(g + b2_ref[...]).astype(o_ref.dtype)


def _se_res_kernel(x_ref, g_ref, r_ref, o_ref):
    """out = relu(x * se_gate + residual), tiled over the HW axis."""
    o_ref[...] = jnp.maximum(x_ref[...] * g_ref[...] + r_ref[...], 0.0)


# ---------------------------------------------------------------------------
# Pallas wrappers
# ---------------------------------------------------------------------------

def pallas_matmul(a, b, bias, act="none"):
    """a:(M,K) f32 @ b:(K,N) bf16 + bias:(1,N) f32, fused activation. Returns (M,N) f32."""
    M, K = a.shape
    K2, N = b.shape
    assert K == K2

    Mp = _round_up(max(M, 8), 8)
    tm = 256 if Mp >= 256 else Mp
    Mp = _round_up(Mp, tm)
    # K / N tiles: multiples of 128 when possible, otherwise a single full-extent block
    tk = 512 if K % 512 == 0 else (256 if K % 256 == 0 else (128 if K % 128 == 0 else K))
    tn = 256 if N % 256 == 0 else (128 if N % 128 == 0 else N)

    if Mp != M:
        a = jnp.pad(a, ((0, Mp - M), (0, 0)))

    grid = (Mp // tm, N // tn, K // tk)
    out = pl.pallas_call(
        functools.partial(_matmul_kernel, act=act),
        out_shape=jax.ShapeDtypeStruct((Mp, N), DTYPE),
        grid_spec=pltpu.PrefetchScalarGridSpec(
            num_scalar_prefetch=0,
            grid=grid,
            in_specs=[
                pl.BlockSpec((tm, tk), lambda i, j, k: (i, k)),
                pl.BlockSpec((tk, tn), lambda i, j, k: (k, j)),
                pl.BlockSpec((1, tn), lambda i, j, k: (0, j)),
            ],
            out_specs=pl.BlockSpec((tm, tn), lambda i, j, k: (i, j)),
        ),
        compiler_params=pltpu.CompilerParams(
            dimension_semantics=("parallel", "parallel", "arbitrary")),
    )(a, b, bias)
    return out[:M] if Mp != M else out


def conv1x1(x, w, bias, stride=1, act="none"):
    """1x1 conv (+folded BN +act): pure matmul over channels; stride is a spatial slice."""
    if stride > 1:
        x = x[:, ::stride, ::stride, :]
    N, H, W, Cin = x.shape
    Cout = w.shape[1]
    y = pallas_matmul(x.reshape(N * H * W, Cin), w, bias, act=act)
    return y.reshape(N, H, W, Cout)


def conv3x3_same(x, w9, bias, act="relu"):
    """3x3 conv, stride 1, pad 1 (+folded BN +act) without materializing im2col patches.

    The padded input is flattened to rows of width Wr=W+2; the "extended" output shares the
    same row stride, so every kernel tap (di, dj) is a constant row shift di*Wr+dj of the same
    flat array. Garbage rows/cols are sliced off afterwards.
    """
    N, H, W, Cin = x.shape
    Cout = w9.shape[-1]
    He, Wr = H + 2, W + 2

    xp = jnp.pad(x, ((0, 0), (1, 1), (1, 1), (0, 0)))
    xf = xp.reshape(N * He * Wr, Cin)
    Mext = N * He * Wr

    tm = min(256, _round_up(Mext, 8))
    n_tiles = _ceil_div(Mext, tm)
    halo = _round_up(2 * Wr + 2, 8)
    copy_rows = tm + halo
    M_total = n_tiles * tm + halo
    xf = jnp.pad(xf, ((0, M_total - Mext), (0, 0)))

    shifts = tuple(di * Wr + dj for di in range(3) for dj in range(3))

    out = pl.pallas_call(
        functools.partial(_conv3x3_kernel, tm=tm, shifts=shifts, act=act),
        out_shape=jax.ShapeDtypeStruct((n_tiles * tm, Cout), DTYPE),
        grid_spec=pltpu.PrefetchScalarGridSpec(
            num_scalar_prefetch=0,
            grid=(n_tiles,),
            in_specs=[
                pl.BlockSpec(memory_space=pl.ANY),                 # flat padded input (HBM)
                pl.BlockSpec((9, Cin, Cout), lambda i: (0, 0, 0)),  # weights, resident
                pl.BlockSpec((1, Cout), lambda i: (0, 0)),          # folded BN shift
            ],
            out_specs=pl.BlockSpec((tm, Cout), lambda i: (i, 0)),
            scratch_shapes=[
                pltpu.VMEM((copy_rows, Cin), DTYPE),
                pltpu.SemaphoreType.DMA,
            ],
        ),
        compiler_params=pltpu.CompilerParams(dimension_semantics=("parallel",)),
    )(xf, w9, bias)

    out = out[:Mext].reshape(N, He, Wr, Cout)
    return out[:, :H, :W, :]


def conv2d_im2col(x, w2d, bias, kh, kw, stride, pad, act="none"):
    """Generic conv (used only for the one-off 7x7 stride-2 stem): im2col + Pallas matmul."""
    N, H, W, Cin = x.shape
    Cout = w2d.shape[1]
    xp = jnp.pad(x, ((0, 0), (pad, pad), (pad, pad), (0, 0)))
    Ho = (H + 2 * pad - kh) // stride + 1
    Wo = (W + 2 * pad - kw) // stride + 1
    cols = []
    for i in range(kh):
        for j in range(kw):
            cols.append(xp[:, i:i + stride * Ho:stride, j:j + stride * Wo:stride, :])
    patches = jnp.stack(cols, axis=3)                       # (N, Ho, Wo, kh*kw, Cin)
    a = patches.reshape(N * Ho * Wo, kh * kw * Cin)
    y = pallas_matmul(a, w2d, bias, act=act)
    return y.reshape(N, Ho, Wo, Cout)


def global_avg_pool(x3):
    """(N, HW, C) f32 -> (N, C) f32, tiled reduction over the HW axis."""
    N, HW, C = x3.shape
    HWp = _round_up(HW, 8)
    t = min(HWp, 256)
    HWp = _round_up(HWp, t)
    if HWp != HW:
        x3 = jnp.pad(x3, ((0, 0), (0, HWp - HW), (0, 0)))   # zero rows: sum unaffected
    return pl.pallas_call(
        functools.partial(_gap_kernel, inv_hw=1.0 / HW),
        out_shape=jax.ShapeDtypeStruct((N, C), DTYPE),
        grid_spec=pltpu.PrefetchScalarGridSpec(
            num_scalar_prefetch=0,
            grid=(HWp // t,),
            in_specs=[pl.BlockSpec((N, t, C), lambda k: (0, k, 0))],
            out_specs=pl.BlockSpec((N, C), lambda k: (0, 0)),
        ),
        compiler_params=pltpu.CompilerParams(dimension_semantics=("arbitrary",)),
    )(x3)


def se_gate(pooled, w1, b1, w2, b2):
    """Fused SE excitation MLP; pooled:(N,C) -> gate:(N,C)."""
    N, C = pooled.shape
    Np = max(_round_up(N, 8), 8)
    if Np != N:
        pooled = jnp.pad(pooled, ((0, Np - N), (0, 0)))
    gate = pl.pallas_call(
        _se_fc_kernel,
        out_shape=jax.ShapeDtypeStruct((Np, C), DTYPE),
    )(pooled, w1, b1, w2, b2)
    return gate[:N]


def se_scale_residual_relu(out3, gate, res3):
    """relu(out * gate + residual); blocks tiled over the HW axis."""
    N, HW, C = out3.shape
    HWp = _round_up(HW, 8)
    t = min(HWp, 256)
    HWp = _round_up(HWp, t)
    if HWp != HW:
        padw = ((0, 0), (0, HWp - HW), (0, 0))
        out3 = jnp.pad(out3, padw)
        res3 = jnp.pad(res3, padw)
    gate3 = gate.reshape(N, 1, C)
    y = pl.pallas_call(
        _se_res_kernel,
        out_shape=jax.ShapeDtypeStruct((N, HWp, C), DTYPE),
        grid_spec=pltpu.PrefetchScalarGridSpec(
            num_scalar_prefetch=0,
            grid=(HWp // t,),
            in_specs=[
                pl.BlockSpec((N, t, C), lambda k: (0, k, 0)),
                pl.BlockSpec((N, 1, C), lambda k: (0, 0, 0)),
                pl.BlockSpec((N, t, C), lambda k: (0, k, 0)),
            ],
            out_specs=pl.BlockSpec((N, t, C), lambda k: (0, k, 0)),
        ),
        compiler_params=pltpu.CompilerParams(dimension_semantics=("parallel",)),
    )(out3, gate3, res3)
    return y[:, :HW, :]


def maxpool2d_ceil(x, k=3, s=2):
    """MaxPool2d(kernel=3, stride=2, ceil_mode=True) as a fused max over 9 shifted slices.

    Done once per forward; the previous (k*k, M, C) stacked tensor is no longer materialized.
    """
    N, H, W, C = x.shape
    Ho = -((H - k) // -s) + 1
    Wo = -((W - k) // -s) + 1
    Hp = (Ho - 1) * s + k
    Wp = (Wo - 1) * s + k
    xp = jnp.pad(x, ((0, 0), (0, Hp - H), (0, Wp - W), (0, 0)),
                 constant_values=-jnp.inf)
    out = None
    for i in range(k):
        for j in range(k):
            sl = xp[:, i:i + s * Ho:s, j:j + s * Wo:s, :]
            out = sl if out is None else jnp.maximum(out, sl)
    return out


# ---------------------------------------------------------------------------
# Deterministic parameter synthesis (shapes match pretrainedmodels.se_resnet152)
# BN running stats are folded into conv weights (scale on Cout) + bias (shift).
# ---------------------------------------------------------------------------

class ParamGen:
    def __init__(self, seed=0):
        self.rng = np.random.RandomState(seed)

    def _conv_w(self, kh, kw, cin, cout):
        fan_in = kh * kw * cin
        return self.rng.normal(0.0, np.sqrt(2.0 / fan_in), (kh, kw, cin, cout))

    def _bn(self, c):
        gamma = 1.0 + 0.1 * self.rng.normal(size=c)
        beta = 0.1 * self.rng.normal(size=c)
        mean = 0.1 * self.rng.normal(size=c)
        var = 1.0 + 0.1 * np.abs(self.rng.normal(size=c))
        scale = gamma / np.sqrt(var + 1e-5)
        shift = beta - mean * scale
        return scale, shift

    def conv_bn(self, kh, kw, cin, cout):
        w = self._conv_w(kh, kw, cin, cout)
        scale, shift = self._bn(cout)
        return w * scale, shift                           # BN folded into conv (eval mode)

    def linear(self, cin, cout):
        bound = 1.0 / np.sqrt(cin)
        w = self.rng.uniform(-bound, bound, (cin, cout))
        b = self.rng.uniform(-bound, bound, (cout,))
        return w, b


def build_params(num_classes, seed=0):
    pg = ParamGen(seed)
    P = {}
    # layer0: conv7x7 s2 p3 (+bn+relu) -> maxpool3x3 s2 ceil
    w, b = pg.conv_bn(7, 7, 3, 64)
    P["stem_w"] = jnp.asarray(w.reshape(7 * 7 * 3, 64), WDTYPE)
    P["stem_b"] = jnp.asarray(b.reshape(1, 64), DTYPE)

    # SE-ResNet-152: bottleneck counts [3, 8, 36, 3], reduction 16, stride on conv1
    layer_cfg = [(64, 3, 1), (128, 8, 2), (256, 36, 2), (512, 3, 2)]
    inplanes = 64
    layers = []
    for planes, blocks, stride in layer_cfg:
        blks = []
        for bi in range(blocks):
            s = stride if bi == 0 else 1
            blk = {"stride": s}
            w, b = pg.conv_bn(1, 1, inplanes, planes)
            blk["conv1_w"] = jnp.asarray(w.reshape(inplanes, planes), WDTYPE)
            blk["conv1_b"] = jnp.asarray(b.reshape(1, planes), DTYPE)
            w, b = pg.conv_bn(3, 3, planes, planes)
            blk["conv2_w"] = jnp.asarray(w.reshape(9, planes, planes), WDTYPE)
            blk["conv2_b"] = jnp.asarray(b.reshape(1, planes), DTYPE)
            w, b = pg.conv_bn(1, 1, planes, planes * 4)
            blk["conv3_w"] = jnp.asarray(w.reshape(planes, planes * 4), WDTYPE)
            blk["conv3_b"] = jnp.asarray(b.reshape(1, planes * 4), DTYPE)
            red = planes * 4 // 16
            w, b = pg.linear(planes * 4, red)
            blk["se_w1"] = jnp.asarray(w, WDTYPE)
            blk["se_b1"] = jnp.asarray(b.reshape(1, red), DTYPE)
            w, b = pg.linear(red, planes * 4)
            blk["se_w2"] = jnp.asarray(w, WDTYPE)
            blk["se_b2"] = jnp.asarray(b.reshape(1, planes * 4), DTYPE)
            if s != 1 or inplanes != planes * 4:
                w, b = pg.conv_bn(1, 1, inplanes, planes * 4)
                blk["down_w"] = jnp.asarray(w.reshape(inplanes, planes * 4), WDTYPE)
                blk["down_b"] = jnp.asarray(b.reshape(1, planes * 4), DTYPE)
            blks.append(blk)
            inplanes = planes * 4
        layers.append(blks)
    P["layers"] = layers

    w, b = pg.linear(2048, num_classes)
    P["fc_w"] = jnp.asarray(w, WDTYPE)
    P["fc_b"] = jnp.asarray(b.reshape(1, num_classes), DTYPE)
    return P


# ---------------------------------------------------------------------------
# Forward pass
# ---------------------------------------------------------------------------

def se_bottleneck(x, blk):
    s = blk["stride"]
    out = conv1x1(x, blk["conv1_w"], blk["conv1_b"], stride=s, act="relu")
    out = conv3x3_same(out, blk["conv2_w"], blk["conv2_b"], act="relu")
    out = conv1x1(out, blk["conv3_w"], blk["conv3_b"], stride=1, act="none")

    if "down_w" in blk:
        residual = conv1x1(x, blk["down_w"], blk["down_b"], stride=s, act="none")
    else:
        residual = x

    N, H, W, C = out.shape
    out3 = out.reshape(N, H * W, C)
    pooled = global_avg_pool(out3)                                        # (N, C)
    gate = se_gate(pooled, blk["se_w1"], blk["se_b1"],
                   blk["se_w2"], blk["se_b2"])                            # (N, C)
    y = se_scale_residual_relu(out3, gate, residual.reshape(N, H * W, C))
    return y.reshape(N, H, W, C)


def model_seresnet_forward(x_nchw, params):
    # PyTorch NCHW in -> NHWC internally
    x = jnp.transpose(x_nchw, (0, 2, 3, 1)).astype(DTYPE)
    x = conv2d_im2col(x, params["stem_w"], params["stem_b"],
                      kh=7, kw=7, stride=2, pad=3, act="relu")            # conv+bn+relu
    x = maxpool2d_ceil(x, k=3, s=2)
    for blks in params["layers"]:
        for blk in blks:
            x = se_bottleneck(x, blk)
    N, H, W, C = x.shape
    pooled = global_avg_pool(x.reshape(N, H * W, C))    # AdaptiveAvgPool2d(1) + view
    return pallas_matmul(pooled, params["fc_w"], params["fc_b"],
                         act="none")                    # Linear(2048, num_classes)


# ---------------------------------------------------------------------------

if __name__ == "__main__":
    num_classes = 10
    batch, in_ch, spatial = 2, 3, 32            # small spatial; 2048-ch features at 1x1
    key = jax.random.PRNGKey(0)
    x = jax.random.normal(key, (batch, in_ch, spatial, spatial), dtype=DTYPE)

    params = build_params(num_classes, seed=0)
    logits = model_seresnet_forward(x, params)
    logits = jax.block_until_ready(logits)

    assert logits.shape == (batch, num_classes)
    assert bool(jnp.all(jnp.isfinite(logits)))
    print("KERNEL_OK")
</pallas_src>

<mosaic_0001>
module attributes {stable_mosaic.version = 11 : i64} {
  func.func @_matmul_kernel(%arg0: i32, %arg1: i32, %arg2: i32, %arg3: memref<256x147xf32, #tpu.memory_space<vmem>>, %arg4: memref<147x64xbf16, #tpu.memory_space<vmem>>, %arg5: memref<1x64xf32, #tpu.memory_space<vmem>>, %arg6: memref<256x64xf32, #tpu.memory_space<vmem>>) attributes {dimension_semantics = [#tpu.dimension_semantics<parallel>, #tpu.dimension_semantics<parallel>, #tpu.dimension_semantics<arbitrary>], iteration_bounds = array<i64: 2, 1, 1>, scalar_prefetch = 0 : i64, scratch_operands = 0 : i64, tpu.core_type = #tpu.core_type<tc>, window_params = [{transform_indices = @transform_0, window_bounds = array<i64: 256, 147>}, {transform_indices = @transform_1, window_bounds = array<i64: 147, 64>}, {transform_indices = @transform_2, window_bounds = array<i64: 1, 64>}, {transform_indices = @transform_3, window_bounds = array<i64: 256, 64>}]} {
    %c0_i32 = arith.constant 0 : i32
    %0 = arith.cmpi eq, %arg2, %c0_i32 : i32
    %1 = arith.extui %0 : i1 to i32
    %c0_i32_0 = arith.constant 0 : i32
    %2 = arith.cmpi ne, %1, %c0_i32_0 : i32
    scf.if %2 {
      %cst_10 = arith.constant 0.000000e+00 : f32
      %13 = vector.broadcast %cst_10 : f32 to vector<256x64xf32>
      %c0_11 = arith.constant 0 : index
      %c0_12 = arith.constant 0 : index
      %14 = vector.load %arg6[%c0_11, %c0_12] : memref<256x64xf32, #tpu.memory_space<vmem>>, vector<256x64xf32>
      tpu.vector_store %arg6[%c0_11, %c0_12], %13 {strides = array<i32>} : memref<256x64xf32, #tpu.memory_space<vmem>>, vector<256x64xf32>,
    } else {
    }
    %c0 = arith.constant 0 : index
    %c0_1 = arith.constant 0 : index
    %3 = vector.load %arg6[%c0, %c0_1] : memref<256x64xf32, #tpu.memory_space<vmem>>, vector<256x64xf32>
    %c0_2 = arith.constant 0 : index
    %c0_3 = arith.constant 0 : index
    %4 = vector.load %arg3[%c0_2, %c0_3] : memref<256x147xf32, #tpu.memory_space<vmem>>, vector<256x147xf32>
    %5 = arith.truncf %4 : vector<256x147xf32> to vector<256x147xbf16>
    %c0_4 = arith.constant 0 : index
    %c0_5 = arith.constant 0 : index
    %6 = vector.load %arg4[%c0_4, %c0_5] : memref<147x64xbf16, #tpu.memory_space<vmem>>, vector<147x64xbf16>
    %cst = arith.constant dense<0.000000e+00> : vector<256x64xf32>
    %7 = tpu.matmul %5, %6, %cst {dimension_numbers = #tpu.dot_dimension_numbers<[1], [0], [0], [1], [0, 0, 1, 1], [], []>} : vector<256x147xbf16>, vector<147x64xbf16>, vector<256x64xf32> -> vector<256x64xf32>
    %8 = arith.addf %3, %7 : vector<256x64xf32>
    %c0_6 = arith.constant 0 : index
    %c0_7 = arith.constant 0 : index
    %9 = vector.load %arg6[%c0_6, %c0_7] : memref<256x64xf32, #tpu.memory_space<vmem>>, vector<256x64xf32>
    tpu.vector_store %arg6[%c0_6, %c0_7], %8 {strides = array<i32>} : memref<256x64xf32, #tpu.memory_space<vmem>>, vector<256x64xf32>,
    %c0_i32_8 = arith.constant 0 : i32
    %10 = arith.cmpi eq, %arg2, %c0_i32_8 : i32
    %11 = arith.extui %10 : i1 to i32
    %c0_i32_9 = arith.constant 0 : i32
    %12 = arith.cmpi ne, %11, %c0_i32_9 : i32
    scf.if %12 {
      %c0_10 = arith.constant 0 : index
      %c0_11 = arith.constant 0 : index
      %13 = vector.load %arg6[%c0_10, %c0_11] : memref<256x64xf32, #tpu.memory_space<vmem>>, vector<256x64xf32>
      %c0_12 = arith.constant 0 : index
      %c0_13 = arith.constant 0 : index
      %14 = vector.load %arg5[%c0_12, %c0_13] : memref<1x64xf32, #tpu.memory_space<vmem>>, vector<1x64xf32>
      %15 = vector.broadcast %14 : vector<1x64xf32> to vector<256x64xf32>
      %16 = arith.addf %13, %15 : vector<256x64xf32>
      %cst_14 = arith.constant 0.000000e+00 : f32
      %17 = vector.broadcast %cst_14 : f32 to vector<256x64xf32>
      %18 = arith.maximumf %16, %17 : vector<256x64xf32>
      %c0_15 = arith.constant 0 : index
      %c0_16 = arith.constant 0 : index
      %19 = vector.load %arg6[%c0_15, %c0_16] : memref<256x64xf32, #tpu.memory_space<vmem>>, vector<256x64xf32>
      tpu.vector_store %arg6[%c0_15, %c0_16], %18 {strides = array<i32>} : memref<256x64xf32, #tpu.memory_space<vmem>>, vector<256x64xf32>,
    } else {
    }
    return
  }
  func.func @transform_0(%arg0: i32, %arg1: i32, %arg2: i32) -> (i32, i32) {
    %c0_i32 = arith.constant 0 : i32
    return %arg0, %arg2 : i32, i32
  }
  func.func @transform_1(%arg0: i32, %arg1: i32, %arg2: i32) -> (i32, i32) {
    %c0_i32 = arith.constant 0 : i32
    return %arg2, %arg1 : i32, i32
  }
  func.func @transform_2(%arg0: i32, %arg1: i32, %arg2: i32) -> (i32, i32) {
    %c0_i32 = arith.constant 0 : i32
    %c0_i32_0 = arith.constant 0 : i32
    return %c0_i32, %arg1 : i32, i32
  }
  func.func @transform_3(%arg0: i32, %arg1: i32, %arg2: i32) -> (i32, i32) {
    %c0_i32 = arith.constant 0 : i32
    return %arg0, %arg1 : i32, i32
  }
}

</mosaic_0001>

<llo_original>
// kernel: tpu_custom_call.1
$region0: #{tpu_custom_call.1}
  #allocation0 [shape = 'u32[]', space=smem, size = 0x4, offset = 0x4, fixed_abs, tag = 'smem constant byte address 0x4 - core index']
  #allocation1 [shape = 'u32[72,128]{1,0:T(1,128)}', space=vmem, size = 0x9000, scoped, tag = 'internal scratch']
  %s0 = inlined_call_operand.vmem [shape: f32[512,147], index: 0, kind: input, shape index: {}]
  %s1 = inlined_call_operand.vmem [shape: bf16[147,64], index: 1, kind: input, shape index: {}]
  %s2 = inlined_call_operand.vmem [shape: f32[1,64], index: 2, kind: input, shape index: {}]
  %s3 = inlined_call_operand.vmem [shape: f32[512,64], index: 3, kind: output, shape index: {}]
  %s4 = sld [smem:[#allocation0]]
  $region53: #{tpu_custom_call.1} parent=0
    _
  %s6 = ssub.s32 1, %s4
  %s7 = scalar_select 0, %s6, %s4
  loop: start=0, step=1, limit=4
  $region2: #{tpu_custom_call.1} parent=0 // loop_pre_header
    _
  $region3: #{tpu_custom_call.1} parent=0 // loop_header
    %s9 = sphi 0, %s13
    %p10 = scmp.ge.s32.totalorder %s9, 4
    %s16 = sphi 0, %s35
    %s17 = sphi 0, %s31
    %s18 = sphi 0, %s27
    %s19 = sphi 0, %s16
    %s20 = sphi 0, %s17
    %s21 = sphi 0, %s18
    %s22 = sphi 0, %s19
    %s23 = sphi 0, %s20
    %s24 = sphi 0, %s21
    %s40 = sphi 0, %s42
    %s43 = sphi 0, %s40
    %s44 = sphi 0, %s43
    %s60 = sphi 0, %s44
    %s68 = sphi 0, %s70
    %s71 = sphi 0, %s68
    %s72 = sphi 0, %s71
    %s88 = sphi 0, %s72
    %s94 = sphi 0, %s96
    %s97 = sphi 0, %s94
    %s98 = sphi 0, %s97
    %s114 = sphi 0, %s98
    %s122 = sphi 0, %s124
    %s125 = sphi 0, %s122
    %s126 = sphi 0, %s125
    %s142 = sphi 0, %s126
  $region4: #{tpu_custom_call.1} parent=0 // loop_header_branch
    %12 = sbr.rel (%p10) target = $region8
  $region5: #{tpu_custom_call.1} parent=0 // loop_body
    %s14 = ssub.s32 %s9, 1
    %s15 = ssub.s32 %s9, 2
    %s25 = sadd.s32 1, %s18
    %p26 = scmp.ge.s32.totalorder %s25, 1
    %s27 = scalar_select %p26, 0, %s25
    %s28 = sadd.s32 1, %s17
    %s29 = scalar_select %p26, %s28, %s17
    %p30 = scmp.ge.s32.totalorder %s29, 1
    %s31 = scalar_select %p30, 0, %s29
    %s32 = sadd.s32 1, %s16
    %s33 = scalar_select %p30, %s32, %s16
    %p34 = scmp.ge.s32.totalorder %s33, 2
    %s35 = scalar_select %p34, 0, %s33
    %s36 = ssub.s32 %s16, %s35
    %s37 = ssub.s32 %s18, %s27
    %s38 = sor.u32 %s36, %s37
    %p39 = scmp.eq.s32.totalorder %s38, 0
    %s41 = sadd.s32 %s40, 1
    %s42 = scalar_select %p39, %s40, %s41
    %p45 = pneg %p39
    %p46 = scmp.eq.s32.totalorder %s9, 1
    %p47 = por %p45, %p46
    %p48 = scmp.ne.s32.totalorder %s40, %s43
    %p49 = scmp.eq.s32.totalorder %s9, 0
    %p50 = por %p48, %p49
    %p51 = scmp.ne.s32.totalorder %s40, %s43
    %p52 = scmp.eq.s32.totalorder %s14, 1
    %p53 = por %p51, %p52
    %p54 = scmp.ne.s32.totalorder %s43, %s44
    %p55 = scmp.eq.s32.totalorder %s14, 0
    %p56 = por %p54, %p55
    %p57 = scmp.ne.s32.totalorder %s43, %s44
    %p58 = scmp.eq.s32.totalorder %s15, 1
    %p59 = por %p57, %p58
    %p61 = scmp.ne.s32.totalorder %s44, %s60
    %p62 = scmp.eq.s32.totalorder %s15, 0
    %p63 = por %p61, %p62
    %s64 = ssub.s32 %s18, %s27
    %s65 = ssub.s32 %s17, %s31
    %s66 = sor.u32 %s64, %s65
    %p67 = scmp.eq.s32.totalorder %s66, 0
    %s69 = sadd.s32 %s68, 1
    %s70 = scalar_select %p67, %s68, %s69
    %p73 = pneg %p67
    %p74 = scmp.eq.s32.totalorder %s9, 1
    %p75 = por %p73, %p74
    %p76 = scmp.ne.s32.totalorder %s68, %s71
    %p77 = scmp.eq.s32.totalorder %s9, 0
    %p78 = por %p76, %p77
    %p79 = scmp.ne.s32.totalorder %s68, %s71
    %p80 = scmp.eq.s32.totalorder %s14, 1
    %p81 = por %p79, %p80
    %p82 = scmp.ne.s32.totalorder %s71, %s72
    %p83 = scmp.eq.s32.totalorder %s14, 0
    %p84 = por %p82, %p83
    %p85 = scmp.ne.s32.totalorder %s71, %s72
    %p86 = scmp.eq.s32.totalorder %s15, 1
    %p87 = por %p85, %p86
    %p89 = scmp.ne.s32.totalorder %s72, %s88
    %p90 = scmp.eq.s32.totalorder %s15, 0
    %p91 = por %p89, %p90
    %s92 = ssub.s32 %s17, %s31
    %p93 = scmp.eq.s32.totalorder %s92, 0
    %s95 = sadd.s32 %s94, 1
    %s96 = scalar_select %p93, %s94, %s95
    %p99 = pneg %p93
    %p100 = scmp.eq.s32.totalorder %s9, 1
    %p101 = por %p99, %p100
    %p102 = scmp.ne.s32.totalorder %s94, %s97
    %p103 = scmp.eq.s32.totalorder %s9, 0
    %p104 = por %p102, %p103
    %p105 = scmp.ne.s32.totalorder %s94, %s97
    %p106 = scmp.eq.s32.totalorder %s14, 1
    %p107 = por %p105, %p106
    %p108 = scmp.ne.s32.totalorder %s97, %s98
    %p109 = scmp.eq.s32.totalorder %s14, 0
    %p110 = por %p108, %p109
    %p111 = scmp.ne.s32.totalorder %s97, %s98
    %p112 = scmp.eq.s32.totalorder %s15, 1
    %p113 = por %p111, %p112
    %p115 = scmp.ne.s32.totalorder %s98, %s114
    %p116 = scmp.eq.s32.totalorder %s15, 0
    %p117 = por %p115, %p116
    %s118 = ssub.s32 %s16, %s35
    %s119 = ssub.s32 %s17, %s31
    %s120 = sor.u32 %s118, %s119
    %p121 = scmp.eq.s32.totalorder %s120, 0
    %s123 = sadd.s32 %s122, 1
    %s124 = scalar_select %p121, %s122, %s123
    %p127 = pneg %p121
    %p128 = scmp.eq.s32.totalorder %s9, 1
    %p129 = por %p127, %p128
    %p130 = scmp.ne.s32.totalorder %s122, %s125
    %p131 = scmp.eq.s32.totalorder %s9, 0
    %p132 = por %p130, %p131
    %p133 = scmp.ne.s32.totalorder %s122, %s125
    %p134 = scmp.eq.s32.totalorder %s14, 1
    %p135 = por %p133, %p134
    %p136 = scmp.ne.s32.totalorder %s125, %s126
    %p137 = scmp.eq.s32.totalorder %s14, 0
    %p138 = por %p136, %p137
    %p139 = scmp.ne.s32.totalorder %s125, %s126
    %p140 = scmp.eq.s32.totalorder %s15, 1
    %p141 = por %p139, %p140
    %p143 = scmp.ne.s32.totalorder %s126, %s142
    %p144 = scmp.eq.s32.totalorder %s15, 0
    %p145 = por %p143, %p144
    %p146 = scmp.le.s32.totalorder 1, %s9
    %p147 = scmp.lt.s32.totalorder %s9, 3
    %p148 = pnand %p146, %p147
    %p149 = pneg %p148
    // Predicated region
    $region9: #{tpu_custom_call.1} parent=5 // pred_check
      _
    $region10: #{tpu_custom_call.1} parent=5 // pred_check_branch
      %151 = sbr.rel (%p148) target = $region12
    $region11: #{tpu_custom_call.1} parent=5 // pred_region
      %s152 = ssub.s32 %s9, 1
      // Predicated region
      $region13: #{tpu_custom_call.1} parent=11 // pred_check
        %p153 = pneg %p84
      $region14: #{tpu_custom_call.1} parent=11 // pred_check_branch
        %155 = sbr.rel (%p153) target = $region16
      $region15: #{tpu_custom_call.1} parent=11 // pred_region
        %s156 = smul.u32 19, %s21
        %p157 = scmp.lt.s32.totalorder %s156, 18
        %s158 = scalar_select %p157, %s156, 18
        %p159 = scmp.lt.s32.totalorder %s20, 0
        %s160 = scalar_select %p159, %s20, 0
        %s161 = sadd.s32 %s160, %s158
        %s162 = smul.addr %s161, 4
        %s163 = scalar_lea.vmem %s1, %s162
        %s164 = smul.u32 19, %s21
      $region16: #{tpu_custom_call.1} parent=11 // pred_fallthru
        _
      // Predicated region
      $region17: #{tpu_custom_call.1} parent=11 // pred_check
        %p165 = pneg %p110
      $region18: #{tpu_custom_call.1} parent=11 // pred_check_branch
        %167 = sbr.rel (%p165) target = $region20
      $region19: #{tpu_custom_call.1} parent=11 // pred_region
        %p168 = scmp.lt.s32.totalorder %s20, 0
        %s169 = scalar_select %p168, %s20, 0
        %s170 = scalar_lea.vmem %s2, %s169
      $region20: #{tpu_custom_call.1} parent=11 // pred_fallthru
        _
    $region12: #{tpu_custom_call.1} parent=5 // pred_fallthru
      _
    %p171 = scmp.lt.s32.totalorder %s9, 2
    // Predicated region
    $region21: #{tpu_custom_call.1} parent=5 // pred_check
      %p172 = pneg %p171
    $region22: #{tpu_custom_call.1} parent=5 // pred_check_branch
      %174 = sbr.rel (%p172) target = $region24
    $region23: #{tpu_custom_call.1} parent=5 // pred_region
      // Predicated region
      $region25: #{tpu_custom_call.1} parent=23 // pred_check
        %p175 = pneg %p50
      $region26: #{tpu_custom_call.1} parent=23 // pred_check_branch
        %177 = sbr.rel (%p175) target = $region28
      $region27: #{tpu_custom_call.1} parent=23 // pred_region
        %s178 = smul.u32 32, %s16
        %s179 = smul.u32 2, %s18
        %p180 = scmp.lt.s32.totalorder %s178, 63
        %s181 = scalar_select %p180, %s178, 63
        %p182 = scmp.lt.s32.totalorder %s179, 1
        %s183 = scalar_select %p182, %s179, 1
        %s184 = smul.addr %s181, 2
        %s185 = sadd.s32 %s183, %s184
        %s186 = smul.addr %s185, 8
        %s187 = scalar_lea.vmem %s0, %s186
        %s188 = smul.u32 32, %s16
        %s189 = smul.u32 2, %s18
      $region28: #{tpu_custom_call.1} parent=23 // pred_fallthru
        _
    $region24: #{tpu_custom_call.1} parent=5 // pred_fallthru
      _
    %p190 = scmp.le.s32.totalorder 1, %s9
    %p191 = scmp.lt.s32.totalorder %s9, 3
    %p192 = pnand %p190, %p191
    %p193 = pneg %p192
    // Predicated region
    $region29: #{tpu_custom_call.1} parent=5 // pred_check
      _
    $region30: #{tpu_custom_call.1} parent=5 // pred_check_branch
      %195 = sbr.rel (%p192) target = $region32
    $region31: #{tpu_custom_call.1} parent=5 // pred_region
      %s196 = ssub.s32 %s9, 1
      %s197 = smul.u32 32, %s19
      %s198 = smul.u32 2, %s21
      %p199 = scmp.lt.s32.totalorder %s197, 63
      %s200 = scalar_select %p199, %s197, 63
      %p201 = scmp.lt.s32.totalorder %s198, 1
      %s202 = scalar_select %p201, %s198, 1
      %s203 = smul.addr %s200, 2
      %s204 = sadd.s32 %s202, %s203
      %s205 = smul.addr %s204, 8
      %s206 = scalar_lea.vmem %s0, %s205
      %p207 = pneg %p56
      %p208 = pneg %p53
      %s209 = smul.u32 19, %s21
      %p210 = scmp.lt.s32.totalorder %s209, 18
      %s211 = scalar_select %p210, %s209, 18
      %p212 = scmp.lt.s32.totalorder %s20, 0
      %s213 = scalar_select %p212, %s20, 0
      %s214 = sadd.s32 %s213, %s211
      %s215 = smul.addr %s214, 4
      %s216 = scalar_lea.vmem %s1, %s215
      %p217 = pneg %p84
      %p218 = pneg %p81
      %p219 = scmp.lt.s32.totalorder %s20, 0
      %s220 = scalar_select %p219, %s20, 0
      %s221 = scalar_lea.vmem %s2, %s220
      %p222 = pneg %p110
      %p223 = pneg %p107
      %p224 = pneg %p138
      %p225 = pneg %p135
      %s226 = smul.u32 32, %s19
      %p227 = scmp.lt.s32.totalorder %s226, 63
      %s228 = scalar_select %p227, %s226, 63
      %p229 = scmp.lt.s32.totalorder %s20, 0
      %s230 = scalar_select %p229, %s20, 0
      %s231 = sadd.s32 %s230, %s228
      %s232 = smul.addr %s231, 8
      %s233 = scalar_lea.vmem %s3, %s232
      %s234 = smul.u32 32, %s19
      %s235 = smul.u32 2, %s21
      %p236 = scmp.lt.s32.totalorder %s234, 63
      %s237 = scalar_select %p236, %s234, 63
      %p238 = scmp.lt.s32.totalorder %s235, 1
      %s239 = scalar_select %p238, %s235, 1
      %s240 = smul.addr %s237, 2
      %s241 = sadd.s32 %s239, %s240
      %s242 = smul.addr %s241, 8
      %s243 = scalar_lea.vmem %s0, %s242
      %s244 = smul.u32 32, %s19
      %s245 = smul.u32 2, %s21
      %s246 = smul.u32 19, %s21
      %p247 = scmp.lt.s32.totalorder %s246, 18
      %s248 = scalar_select %p247, %s246, 18
      %p249 = scmp.lt.s32.totalorder %s20, 0
      %s250 = scalar_select %p249, %s20, 0
      %s251 = sadd.s32 %s250, %s248
      %s252 = smul.addr %s251, 4
      %s253 = scalar_lea.vmem %s1, %s252
      %s254 = smul.u32 19, %s21
      %p255 = scmp.lt.s32.totalorder %s20, 0
      %s256 = scalar_select %p255, %s20, 0
      %s257 = scalar_lea.vmem %s2, %s256
      %s258 = smul.u32 32, %s19
      %p259 = scmp.lt.s32.totalorder %s258, 63
      %s260 = scalar_select %p259, %s258, 63
      %p261 = scmp.lt.s32.totalorder %s20, 0
      %s262 = scalar_select %p261, %s20, 0
      %s263 = sadd.s32 %s262, %s260
      %s264 = smul.addr %s263, 8
      %s265 = scalar_lea.vmem %s3, %s264
      %s266 = smul.u32 32, %s19
      %p268 = scmp.eq.s32.totalorder %s21, 0
      // Predicated region
      $region33: #{tpu_custom_call.1} parent=31 // pred_check
        %p269 = pneg %p268
      $region34: #{tpu_custom_call.1} parent=31 // pred_check_branch
        %271 = sbr.rel (%p269) target = $region36
      $region35: #{tpu_custom_call.1} parent=31 // pred_region
        %vm272 = vcmask 523264
        %273 = vst.msk [vmem:[%s265] sm:$0xff] %vm272, 0.0
        %274 = vst.msk [vmem:[%s265 + $0x8] sm:$0xff] %vm272, 0.0
        %275 = vst.msk [vmem:[%s265 + $0x10] sm:$0xff] %vm272, 0.0
        %276 = vst.msk [vmem:[%s265 + $0x18] sm:$0xff] %vm272, 0.0
        %277 = vst.msk [vmem:[%s265 + $0x20] sm:$0xff] %vm272, 0.0
        %278 = vst.msk [vmem:[%s265 + $0x28] sm:$0xff] %vm272, 0.0
        %279 = vst.msk [vmem:[%s265 + $0x30] sm:$0xff] %vm272, 0.0
        %280 = vst.msk [vmem:[%s265 + $0x38] sm:$0xff] %vm272, 0.0
        %281 = vst.msk [vmem:[%s265 + $0x40] sm:$0xff] %vm272, 0.0
        %282 = vst.msk [vmem:[%s265 + $0x48] sm:$0xff] %vm272, 0.0
        %283 = vst.msk [vmem:[%s265 + $0x50] sm:$0xff] %vm272, 0.0
        %284 = vst.msk [vmem:[%s265 + $0x58] sm:$0xff] %vm272, 0.0
        %285 = vst.msk [vmem:[%s265 + $0x60] sm:$0xff] %vm272, 0.0
        %286 = vst.msk [vmem:[%s265 + $0x68] sm:$0xff] %vm272, 0.0
        %287 = vst.msk [vmem:[%s265 + $0x70] sm:$0xff] %vm272, 0.0
        %288 = vst.msk [vmem:[%s265 + $0x78] sm:$0xff] %vm272, 0.0
        %289 = vst.msk [vmem:[%s265 + $0x80] sm:$0xff] %vm272, 0.0
        %290 = vst.msk [vmem:[%s265 + $0x88] sm:$0xff] %vm272, 0.0
        %291 = vst.msk [vmem:[%s265 + $0x90] sm:$0xff] %vm272, 0.0
        %292 = vst.msk [vmem:[%s265 + $0x98] sm:$0xff] %vm272, 0.0
        %293 = vst.msk [vmem:[%s265 + $0xa0] sm:$0xff] %vm272, 0.0
        %294 = vst.msk [vmem:[%s265 + $0xa8] sm:$0xff] %vm272, 0.0
        %295 = vst.msk [vmem:[%s265 + $0xb0] sm:$0xff] %vm272, 0.0
        %296 = vst.msk [vmem:[%s265 + $0xb8] sm:$0xff] %vm272, 0.0
        %297 = vst.msk [vmem:[%s265 + $0xc0] sm:$0xff] %vm272, 0.0
        %298 = vst.msk [vmem:[%s265 + $0xc8] sm:$0xff] %vm272, 0.0
        %299 = vst.msk [vmem:[%s265 + $0xd0] sm:$0xff] %vm272, 0.0
        %300 = vst.msk [vmem:[%s265 + $0xd8] sm:$0xff] %vm272, 0.0
        %301 = vst.msk [vmem:[%s265 + $0xe0] sm:$0xff] %vm272, 0.0
        %302 = vst.msk [vmem:[%s265 + $0xe8] sm:$0xff] %vm272, 0.0
        %303 = vst.msk [vmem:[%s265 + $0xf0] sm:$0xff] %vm272, 0.0
        %304 = vst.msk [vmem:[%s265 + $0xf8] sm:$0xff] %vm272, 0.0
      $region36: #{tpu_custom_call.1} parent=31 // pred_fallthru
        _
      %v305 = vld [vmem:[%s265] sm:$0xff]
      %v306 = vld [vmem:[%s265 + $0x8] sm:$0xff]
      %v307 = vld [vmem:[%s265 + $0x10] sm:$0xff]
      %v308 = vld [vmem:[%s265 + $0x18] sm:$0xff]
      %v309 = vld [vmem:[%s265 + $0x20] sm:$0xff]
      %v310 = vld [vmem:[%s265 + $0x28] sm:$0xff]
      %v311 = vld [vmem:[%s265 + $0x30] sm:$0xff]
      %v312 = vld [vmem:[%s265 + $0x38] sm:$0xff]
      %v313 = vld [vmem:[%s265 + $0x40] sm:$0xff]
      %v314 = vld [vmem:[%s265 + $0x48] sm:$0xff]
      %v315 = vld [vmem:[%s265 + $0x50] sm:$0xff]
      %v316 = vld [vmem:[%s265 + $0x58] sm:$0xff]
      %v317 = vld [vmem:[%s265 + $0x60] sm:$0xff]
      %v318 = vld [vmem:[%s265 + $0x68] sm:$0xff]
      %v319 = vld [vmem:[%s265 + $0x70] sm:$0xff]
      %v320 = vld [vmem:[%s265 + $0x78] sm:$0xff]
      %v321 = vld [vmem:[%s265 + $0x80] sm:$0xff]
      %v322 = vld [vmem:[%s265 + $0x88] sm:$0xff]
      %v323 = vld [vmem:[%s265 + $0x90] sm:$0xff]
      %v324 = vld [vmem:[%s265 + $0x98] sm:$0xff]
      %v325 = vld [vmem:[%s265 + $0xa0] sm:$0xff]
      %v326 = vld [vmem:[%s265 + $0xa8] sm:$0xff]
      %v327 = vld [vmem:[%s265 + $0xb0] sm:$0xff]
      %v328 = vld [vmem:[%s265 + $0xb8] sm:$0xff]
      %v329 = vld [vmem:[%s265 + $0xc0] sm:$0xff]
      %v330 = vld [vmem:[%s265 + $0xc8] sm:$0xff]
      %v331 = vld [vmem:[%s265 + $0xd0] sm:$0xff]
      %v332 = vld [vmem:[%s265 + $0xd8] sm:$0xff]
      %v333 = vld [vmem:[%s265 + $0xe0] sm:$0xff]
      %v334 = vld [vmem:[%s265 + $0xe8] sm:$0xff]
      %v335 = vld [vmem:[%s265 + $0xf0] sm:$0xff]
      %v336 = vld [vmem:[%s265 + $0xf8] sm:$0xff]
      %v337 = vld [vmem:[%s243] sm:$0xff]
      %v338 = vld [vmem:[%s243 + $0x8] sm:$0xff]
      %v339 = vld [vmem:[%s243 + $0x10] sm:$0xff]
      %v340 = vld [vmem:[%s243 + $0x18] sm:$0xff]
      %v341 = vld [vmem:[%s243 + $0x20] sm:$0xff]
      %v342 = vld [vmem:[%s243 + $0x28] sm:$0xff]
      %v343 = vld [vmem:[%s243 + $0x30] sm:$0xff]
      %v344 = vld [vmem:[%s243 + $0x38] sm:$0xff]
      %v345 = vld [vmem:[%s243 + $0x40] sm:$0xff]
      %v346 = vld [vmem:[%s243 + $0x48] sm:$0xff]
      %v347 = vld [vmem:[%s243 + $0x50] sm:$0xff]
      %v348 = vld [vmem:[%s243 + $0x58] sm:$0xff]
      %v349 = vld [vmem:[%s243 + $0x60] sm:$0xff]
      %v350 = vld [vmem:[%s243 + $0x68] sm:$0xff]
      %v351 = vld [vmem:[%s243 + $0x70] sm:$0xff]
      %v352 = vld [vmem:[%s243 + $0x78] sm:$0xff]
      %v353 = vld [vmem:[%s243 + $0x80] sm:$0xff]
      %v354 = vld [vmem:[%s243 + $0x88] sm:$0xff]
      %v355 = vld [vmem:[%s243 + $0x90] sm:$0xff]
      %v356 = vld [vmem:[%s243 + $0x98] sm:$0xff]
      %v357 = vld [vmem:[%s243 + $0xa0] sm:$0xff]
      %v358 = vld [vmem:[%s243 + $0xa8] sm:$0xff]
      %v359 = vld [vmem:[%s243 + $0xb0] sm:$0xff]
      %v360 = vld [vmem:[%s243 + $0xb8] sm:$0xff]
      %v361 = vld [vmem:[%s243 + $0xc0] sm:$0xff]
      %v362 = vld [vmem:[%s243 + $0xc8] sm:$0xff]
      %v363 = vld [vmem:[%s243 + $0xd0] sm:$0xff]
      %v364 = vld [vmem:[%s243 + $0xd8] sm:$0xff]
      %v365 = vld [vmem:[%s243 + $0xe0] sm:$0xff]
      %v366 = vld [vmem:[%s243 + $0xe8] sm:$0xff]
      %v367 = vld [vmem:[%s243 + $0xf0] sm:$0xff]
      %v368 = vld [vmem:[%s243 + $0xf8] sm:$0xff]
      %v369 = vld [vmem:[%s243 + $0x100] sm:$0xff]
      %v370 = vld [vmem:[%s243 + $0x108] sm:$0xff]
      %v371 = vld [vmem:[%s243 + $0x110] sm:$0xff]
      %v372 = vld [vmem:[%s243 + $0x118] sm:$0xff]
      %v373 = vld [vmem:[%s243 + $0x120] sm:$0xff]
      %v374 = vld [vmem:[%s243 + $0x128] sm:$0xff]
      %v375 = vld [vmem:[%s243 + $0x130] sm:$0xff]
      %v376 = vld [vmem:[%s243 + $0x138] sm:$0xff]
      %v377 = vld [vmem:[%s243 + $0x140] sm:$0xff]
      %v378 = vld [vmem:[%s243 + $0x148] sm:$0xff]
      %v379 = vld [vmem:[%s243 + $0x150] sm:$0xff]
      %v380 = vld [vmem:[%s243 + $0x158] sm:$0xff]
      %v381 = vld [vmem:[%s243 + $0x160] sm:$0xff]
      %v382 = vld [vmem:[%s243 + $0x168] sm:$0xff]
      %v383 = vld [vmem:[%s243 + $0x170] sm:$0xff]
      %v384 = vld [vmem:[%s243 + $0x178] sm:$0xff]
      %v385 = vld [vmem:[%s243 + $0x180] sm:$0xff]
      %v386 = vld [vmem:[%s243 + $0x188] sm:$0xff]
      %v387 = vld [vmem:[%s243 + $0x190] sm:$0xff]
      %v388 = vld [vmem:[%s243 + $0x198] sm:$0xff]
      %v389 = vld [vmem:[%s243 + $0x1a0] sm:$0xff]
      %v390 = vld [vmem:[%s243 + $0x1a8] sm:$0xff]
      %v391 = vld [vmem:[%s243 + $0x1b0] sm:$0xff]
      %v392 = vld [vmem:[%s243 + $0x1b8] sm:$0xff]
      %v393 = vld [vmem:[%s243 + $0x1c0] sm:$0xff]
      %v394 = vld [vmem:[%s243 + $0x1c8] sm:$0xff]
      %v395 = vld [vmem:[%s243 + $0x1d0] sm:$0xff]
      %v396 = vld [vmem:[%s243 + $0x1d8] sm:$0xff]
      %v397 = vld [vmem:[%s243 + $0x1e0] sm:$0xff]
      %v398 = vld [vmem:[%s243 + $0x1e8] sm:$0xff]
      %v399 = vld [vmem:[%s243 + $0x1f0] sm:$0xff]
      %v400 = vld [vmem:[%s243 + $0x1f8] sm:$0xff]
      %v401 = vpack.c.bf16 %v339, %v337
      %v402 = vpack.c.bf16 %v340, %v338
      %v403 = vpack.c.bf16 %v343, %v341
      %v404 = vpack.c.bf16 %v344, %v342
      %v405 = vpack.c.bf16 %v347, %v345
      %v406 = vpack.c.bf16 %v348, %v346
      %v407 = vpack.c.bf16 %v351, %v349
      %v408 = vpack.c.bf16 %v352, %v350
      %v409 = vpack.c.bf16 %v355, %v353
      %v410 = vpack.c.bf16 %v356, %v354
      %v411 = vpack.c.bf16 %v359, %v357
      %v412 = vpack.c.bf16 %v360, %v358
      %v413 = vpack.c.bf16 %v363, %v361
      %v414 = vpack.c.bf16 %v364, %v362
      %v415 = vpack.c.bf16 %v367, %v365
      %v416 = vpack.c.bf16 %v368, %v366
      %v417 = vpack.c.bf16 %v371, %v369
      %v418 = vpack.c.bf16 %v372, %v370
      %v419 = vpack.c.bf16 %v375, %v373
      %v420 = vpack.c.bf16 %v376, %v374
      %v421 = vpack.c.bf16 %v379, %v377
      %v422 = vpack.c.bf16 %v380, %v378
      %v423 = vpack.c.bf16 %v383, %v381
      %v424 = vpack.c.bf16 %v384, %v382
      %v425 = vpack.c.bf16 %v387, %v385
      %v426 = vpack.c.bf16 %v388, %v386
      %v427 = vpack.c.bf16 %v391, %v389
      %v428 = vpack.c.bf16 %v392, %v390
      %v429 = vpack.c.bf16 %v395, %v393
      %v430 = vpack.c.bf16 %v396, %v394
      %v431 = vpack.c.bf16 %v399, %v397
      %v432 = vpack.c.bf16 %v400, %v398
      %v433 = vld [vmem:[%s253] sm:$0xf]
      %v434 = vld [vmem:[%s253 + $0x4] sm:$0xf]
      %v435 = vld [vmem:[%s253 + $0x8] sm:$0xf]
      %v436 = vld [vmem:[%s253 + $0xc] sm:$0xf]
      %v437 = vld [vmem:[%s253 + $0x10] sm:$0xf]
      %v438 = vld [vmem:[%s253 + $0x14] sm:$0xf]
      %v439 = vld [vmem:[%s253 + $0x18] sm:$0xf]
      %v440 = vld [vmem:[%s253 + $0x1c] sm:$0xf]
      %v441 = vld [vmem:[%s253 + $0x20] sm:$0xf]
      %v442 = vld [vmem:[%s253 + $0x24] sm:$0xf]
      %v443 = vld [vmem:[%s253 + $0x28] sm:$0xf]
      %v444 = vld [vmem:[%s253 + $0x2c] sm:$0xf]
      %v445 = vld [vmem:[%s253 + $0x30] sm:$0xf]
      %v446 = vld [vmem:[%s253 + $0x34] sm:$0xf]
      %v447 = vld [vmem:[%s253 + $0x38] sm:$0xf]
      %v448 = vld [vmem:[%s253 + $0x3c] sm:$0xf]
      %v449 = vld [vmem:[%s253 + $0x40] sm:$0xf]
      %v450 = vld [vmem:[%s253 + $0x44] sm:$0xf]
      %v451 = vld [vmem:[%s253 + $0x48] sm:$0x3]
      %v471 = vunpack.c.l.b16 %v433
      %v472 = vunpack.c.l.b16 %v434
      %v473 = vunpack.c.l.b16 %v435
      %v474 = vunpack.c.l.b16 %v436
      %v475 = vunpack.c.l.b16 %v437
      %v476 = vunpack.c.l.b16 %v438
      %v477 = vunpack.c.l.b16 %v439
      %v478 = vunpack.c.l.b16 %v440
      %v479 = vunpack.c.l.b16 %v441
      %v480 = vunpack.c.l.b16 %v442
      %v481 = vunpack.c.l.b16 %v443
      %v482 = vunpack.c.l.b16 %v444
      %v483 = vunpack.c.l.b16 %v445
      %v484 = vunpack.c.l.b16 %v446
      %v485 = vunpack.c.l.b16 %v447
      %v486 = vunpack.c.l.b16 %v448
      %v487 = vunpack.c.l.b16 %v449
      %v488 = vunpack.c.l.b16 %v450
      %v489 = vunpack.c.l.b16 %v451
      %v490 = vpack.c.b16 %v472, %v471
      %v491 = vpack.c.b16 %v474, %v473
      %v492 = vpack.c.b16 %v476, %v475
      %v493 = vpack.c.b16 %v478, %v477
      %v494 = vpack.c.b16 %v480, %v479
      %v495 = vpack.c.b16 %v482, %v481
      %v496 = vpack.c.b16 %v484, %v483
      %v497 = vpack.c.b16 %v486, %v485
      %v498 = vpack.c.b16 %v488, %v487
      %v499 = vpack.c.b16 %v489, %v489
      %vm509 = vcmask 154624
      %v511 = vsel %vm509, %v402, 0
      %v514 = vsel %vm509, %v404, 0
      %v517 = vsel %vm509, %v406, 0
      %v520 = vsel %vm509, %v408, 0
      %v523 = vsel %vm509, %v410, 0
      %v526 = vsel %vm509, %v412, 0
      %v529 = vsel %vm509, %v414, 0
      %v532 = vsel %vm509, %v416, 0
      %v535 = vsel %vm509, %v418, 0
      %v538 = vsel %vm509, %v420, 0
      %v541 = vsel %vm509, %v422, 0
      %v544 = vsel %vm509, %v424, 0
      %v547 = vsel %vm509, %v426, 0
      %v550 = vsel %vm509, %v428, 0
      %v553 = vsel %vm509, %v430, 0
      %v556 = vsel %vm509, %v432, 0
      %vm558 = vcmask 1040384
      %vm559 = vcmask 1041408
      %v560 = vsel %vm558, 4294967295, 65535
      %v561 = vsel %vm559, %v560, 0
      %v563 = vand.u32 %v499, %v561
      %565 = vmatpush.bf16.msra.mxu0 %v497
      %566 = vmatpush.bf16.msra.mxu0 %v496
      %567 = vmatpush.bf16.msra.mxu0 %v495
      %568 = vmatpush.bf16.msra.mxu0 %v494
      %569 = vmatpush.bf16.msra.mxu0 %v493
      %570 = vmatpush.bf16.msra.mxu0 %v492
      %571 = vmatpush.bf16.msra.mxu0 %v491
      %572 = vmatpush.bf16.msra.mxu0 %v490
      %573 = vmatmul.bf16.gmra.mxu0 %v401
      %v574 = vpop.f32.mrf.mxu0
      %v575 = vadd.f32 0.0, %v574
      %v576 = vpop.f32.mrf.mxu0
      %v577 = vadd.f32 0.0, %v576
      %578 = vmatmul.bf16.gmra.mxu0 %v403
      %v579 = vpop.f32.mrf.mxu0
      %v580 = vadd.f32 0.0, %v579
      %v581 = vpop.f32.mrf.mxu0
      %v582 = vadd.f32 0.0, %v581
      %583 = vmatmul.bf16.gmra.mxu0 %v405
      %v584 = vpop.f32.mrf.mxu0
      %v585 = vadd.f32 0.0, %v584
      %v586 = vpop.f32.mrf.mxu0
      %v587 = vadd.f32 0.0, %v586
      %588 = vmatmul.bf16.gmra.mxu0 %v407
      %v589 = vpop.f32.mrf.mxu0
      %v590 = vadd.f32 0.0, %v589
      %v591 = vpop.f32.mrf.mxu0
      %v592 = vadd.f32 0.0, %v591
      %593 = vmatmul.bf16.gmra.mxu0 %v409
      %v594 = vpop.f32.mrf.mxu0
      %v595 = vadd.f32 0.0, %v594
      %v596 = vpop.f32.mrf.mxu0
      %v597 = vadd.f32 0.0, %v596
      %598 = vmatmul.bf16.gmra.mxu0 %v411
      %v599 = vpop.f32.mrf.mxu0
      %v600 = vadd.f32 0.0, %v599
      %v601 = vpop.f32.mrf.mxu0
      %v602 = vadd.f32 0.0, %v601
      %603 = vmatmul.bf16.gmra.mxu0 %v413
      %v604 = vpop.f32.mrf.mxu0
      %v605 = vadd.f32 0.0, %v604
      %v606 = vpop.f32.mrf.mxu0
      %v607 = vadd.f32 0.0, %v606
      %608 = vmatmul.bf16.gmra.mxu0 %v415
      %v609 = vpop.f32.mrf.mxu0
      %v610 = vadd.f32 0.0, %v609
      %v611 = vpop.f32.mrf.mxu0
      %v612 = vadd.f32 0.0, %v611
      %613 = vmatmul.bf16.gmra.mxu0 %v417
      %v614 = vpop.f32.mrf.mxu0
      %v615 = vadd.f32 0.0, %v614
      %v616 = vpop.f32.mrf.mxu0
      %v617 = vadd.f32 0.0, %v616
      %618 = vmatmul.bf16.gmra.mxu0 %v419
      %v619 = vpop.f32.mrf.mxu0
      %v620 = vadd.f32 0.0, %v619
      %v621 = vpop.f32.mrf.mxu0
      %v622 = vadd.f32 0.0, %v621
      %623 = vmatmul.bf16.gmra.mxu0 %v421
      %v624 = vpop.f32.mrf.mxu0
      %v625 = vadd.f32 0.0, %v624
      %v626 = vpop.f32.mrf.mxu0
      %v627 = vadd.f32 0.0, %v626
      %628 = vmatmul.bf16.gmra.mxu0 %v423
      %v629 = vpop.f32.mrf.mxu0
      %v630 = vadd.f32 0.0, %v629
      %v631 = vpop.f32.mrf.mxu0
      %v632 = vadd.f32 0.0, %v631
      %633 = vmatmul.bf16.gmra.mxu0 %v425
      %v634 = vpop.f32.mrf.mxu0
      %v635 = vadd.f32 0.0, %v634
      %v636 = vpop.f32.mrf.mxu0
      %v637 = vadd.f32 0.0, %v636
      %638 = vmatmul.bf16.gmra.mxu0 %v427
      %v639 = vpop.f32.mrf.mxu0
      %v640 = vadd.f32 0.0, %v639
      %v641 = vpop.f32.mrf.mxu0
      %v642 = vadd.f32 0.0, %v641
      %643 = vmatmul.bf16.gmra.mxu0 %v429
      %v644 = vpop.f32.mrf.mxu0
      %v645 = vadd.f32 0.0, %v644
      %v646 = vpop.f32.mrf.mxu0
      %v647 = vadd.f32 0.0, %v646
      %648 = vmatmul.bf16.gmra.mxu0 %v431
      %v649 = vpop.f32.mrf.mxu0
      %v650 = vadd.f32 0.0, %v649
      %v651 = vpop.f32.mrf.mxu0
      %v652 = vadd.f32 0.0, %v651
      %653 = vdwg.mxu0
      %654 = vmatpush.bf16.msra.mxu0 0
      %655 = vmatpush.bf16.msra.mxu0 0
      %656 = vmatpush.bf16.msra.mxu0 0
      %657 = vmatpush.bf16.msra.mxu0 0
      %658 = vmatpush.bf16.msra.mxu0 0
      %659 = vmatpush.bf16.msra.mxu0 0
      %660 = vmatpush.bf16.msra.mxu0 %v563
      %661 = vmatpush.bf16.msra.mxu0 %v498
      %662 = vmatmul.bf16.gmra.mxu0 %v511
      %v663 = vpop.f32.mrf.mxu0
      %v664 = vadd.f32 %v575, %v663
      %v665 = vpop.f32.mrf.mxu0
      %v666 = vadd.f32 %v577, %v665
      %667 = vmatmul.bf16.gmra.mxu0 %v514
      %v668 = vpop.f32.mrf.mxu0
      %v669 = vadd.f32 %v580, %v668
      %v670 = vpop.f32.mrf.mxu0
      %v671 = vadd.f32 %v582, %v670
      %672 = vmatmul.bf16.gmra.mxu0 %v517
      %v673 = vpop.f32.mrf.mxu0
      %v674 = vadd.f32 %v585, %v673
      %v675 = vpop.f32.mrf.mxu0
      %v676 = vadd.f32 %v587, %v675
      %677 = vmatmul.bf16.gmra.mxu0 %v520
      %v678 = vpop.f32.mrf.mxu0
      %v679 = vadd.f32 %v590, %v678
      %v680 = vpop.f32.mrf.mxu0
      %v681 = vadd.f32 %v592, %v680
      %682 = vmatmul.bf16.gmra.mxu0 %v523
      %v683 = vpop.f32.mrf.mxu0
      %v684 = vadd.f32 %v595, %v683
      %v685 = vpop.f32.mrf.mxu0
      %v686 = vadd.f32 %v597, %v685
      %687 = vmatmul.bf16.gmra.mxu0 %v526
      %v688 = vpop.f32.mrf.mxu0
      %v689 = vadd.f32 %v600, %v688
      %v690 = vpop.f32.mrf.mxu0
      %v691 = vadd.f32 %v602, %v690
      %692 = vmatmul.bf16.gmra.mxu0 %v529
      %v693 = vpop.f32.mrf.mxu0
      %v694 = vadd.f32 %v605, %v693
      %v695 = vpop.f32.mrf.mxu0
      %v696 = vadd.f32 %v607, %v695
      %697 = vmatmul.bf16.gmra.mxu0 %v532
      %v698 = vpop.f32.mrf.mxu0
      %v699 = vadd.f32 %v610, %v698
      %v700 = vpop.f32.mrf.mxu0
      %v701 = vadd.f32 %v612, %v700
      %702 = vmatmul.bf16.gmra.mxu0 %v535
      %v703 = vpop.f32.mrf.mxu0
      %v704 = vadd.f32 %v615, %v703
      %v705 = vpop.f32.mrf.mxu0
      %v706 = vadd.f32 %v617, %v705
      %707 = vmatmul.bf16.gmra.mxu0 %v538
      %v708 = vpop.f32.mrf.mxu0
      %v709 = vadd.f32 %v620, %v708
      %v710 = vpop.f32.mrf.mxu0
      %v711 = vadd.f32 %v622, %v710
      %712 = vmatmul.bf16.gmra.mxu0 %v541
      %v713 = vpop.f32.mrf.mxu0
      %v714 = vadd.f32 %v625, %v713
      %v715 = vpop.f32.mrf.mxu0
      %v716 = vadd.f32 %v627, %v715
      %717 = vmatmul.bf16.gmra.mxu0 %v544
      %v718 = vpop.f32.mrf.mxu0
      %v719 = vadd.f32 %v630, %v718
      %v720 = vpop.f32.mrf.mxu0
      %v721 = vadd.f32 %v632, %v720
      %722 = vmatmul.bf16.gmra.mxu0 %v547
      %v723 = vpop.f32.mrf.mxu0
      %v724 = vadd.f32 %v635, %v723
      %v725 = vpop.f32.mrf.mxu0
      %v726 = vadd.f32 %v637, %v725
      %727 = vmatmul.bf16.gmra.mxu0 %v550
      %v728 = vpop.f32.mrf.mxu0
      %v729 = vadd.f32 %v640, %v728
      %v730 = vpop.f32.mrf.mxu0
      %v731 = vadd.f32 %v642, %v730
      %732 = vmatmul.bf16.gmra.mxu0 %v553
      %v733 = vpop.f32.mrf.mxu0
      %v734 = vadd.f32 %v645, %v733
      %v735 = vpop.f32.mrf.mxu0
      %v736 = vadd.f32 %v647, %v735
      %737 = vmatmul.bf16.gmra.mxu0 %v556
      %v738 = vpop.f32.mrf.mxu0
      %v739 = vadd.f32 %v650, %v738
      %v740 = vpop.f32.mrf.mxu0
      %v741 = vadd.f32 %v652, %v740
      %742 = vdwg.mxu0
      %v743 = vadd.f32 %v305, %v664
      %v744 = vadd.f32 %v306, %v666
      %v745 = vadd.f32 %v307, %v669
      %v746 = vadd.f32 %v308, %v671
      %v747 = vadd.f32 %v309, %v674
      %v748 = vadd.f32 %v310, %v676
      %v749 = vadd.f32 %v311, %v679
      %v750 = vadd.f32 %v312, %v681
      %v751 = vadd.f32 %v313, %v684
      %v752 = vadd.f32 %v314, %v686
      %v753 = vadd.f32 %v315, %v689
      %v754 = vadd.f32 %v316, %v691
      %v755 = vadd.f32 %v317, %v694
      %v756 = vadd.f32 %v318, %v696
      %v757 = vadd.f32 %v319, %v699
      %v758 = vadd.f32 %v320, %v701
      %v759 = vadd.f32 %v321, %v704
      %v760 = vadd.f32 %v322, %v706
      %v761 = vadd.f32 %v323, %v709
      %v762 = vadd.f32 %v324, %v711
      %v763 = vadd.f32 %v325, %v714
      %v764 = vadd.f32 %v326, %v716
      %v765 = vadd.f32 %v327, %v719
      %v766 = vadd.f32 %v328, %v721
      %v767 = vadd.f32 %v329, %v724
      %v768 = vadd.f32 %v330, %v726
      %v769 = vadd.f32 %v331, %v729
      %v770 = vadd.f32 %v332, %v731
      %v771 = vadd.f32 %v333, %v734
      %v772 = vadd.f32 %v334, %v736
      %v773 = vadd.f32 %v335, %v739
      %v774 = vadd.f32 %v336, %v741
      %vm775 = vcmask 523264
      %776 = vst.msk [vmem:[%s265] sm:$0xff] %vm775, %v743
      %777 = vst.msk [vmem:[%s265 + $0x8] sm:$0xff] %vm775, %v744
      %778 = vst.msk [vmem:[%s265 + $0x10] sm:$0xff] %vm775, %v745
      %779 = vst.msk [vmem:[%s265 + $0x18] sm:$0xff] %vm775, %v746
      %780 = vst.msk [vmem:[%s265 + $0x20] sm:$0xff] %vm775, %v747
      %781 = vst.msk [vmem:[%s265 + $0x28] sm:$0xff] %vm775, %v748
      %782 = vst.msk [vmem:[%s265 + $0x30] sm:$0xff] %vm775, %v749
      %783 = vst.msk [vmem:[%s265 + $0x38] sm:$0xff] %vm775, %v750
      %784 = vst.msk [vmem:[%s265 + $0x40] sm:$0xff] %vm775, %v751
      %785 = vst.msk [vmem:[%s265 + $0x48] sm:$0xff] %vm775, %v752
      %786 = vst.msk [vmem:[%s265 + $0x50] sm:$0xff] %vm775, %v753
      %787 = vst.msk [vmem:[%s265 + $0x58] sm:$0xff] %vm775, %v754
      %788 = vst.msk [vmem:[%s265 + $0x60] sm:$0xff] %vm775, %v755
      %789 = vst.msk [vmem:[%s265 + $0x68] sm:$0xff] %vm775, %v756
      %790 = vst.msk [vmem:[%s265 + $0x70] sm:$0xff] %vm775, %v757
      %791 = vst.msk [vmem:[%s265 + $0x78] sm:$0xff] %vm775, %v758
      %792 = vst.msk [vmem:[%s265 + $0x80] sm:$0xff] %vm775, %v759
      %793 = vst.msk [vmem:[%s265 + $0x88] sm:$0xff] %vm775, %v760
      %794 = vst.msk [vmem:[%s265 + $0x90] sm:$0xff] %vm775, %v761
      %795 = vst.msk [vmem:[%s265 + $0x98] sm:$0xff] %vm775, %v762
      %796 = vst.msk [vmem:[%s265 + $0xa0] sm:$0xff] %vm775, %v763
      %797 = vst.msk [vmem:[%s265 + $0xa8] sm:$0xff] %vm775, %v764
      %798 = vst.msk [vmem:[%s265 + $0xb0] sm:$0xff] %vm775, %v765
      %799 = vst.msk [vmem:[%s265 + $0xb8] sm:$0xff] %vm775, %v766
      %800 = vst.msk [vmem:[%s265 + $0xc0] sm:$0xff] %vm775, %v767
      %801 = vst.msk [vmem:[%s265 + $0xc8] sm:$0xff] %vm775, %v768
      %802 = vst.msk [vmem:[%s265 + $0xd0] sm:$0xff] %vm775, %v769
      %803 = vst.msk [vmem:[%s265 + $0xd8] sm:$0xff] %vm775, %v770
      %804 = vst.msk [vmem:[%s265 + $0xe0] sm:$0xff] %vm775, %v771
      %805 = vst.msk [vmem:[%s265 + $0xe8] sm:$0xff] %vm775, %v772
      %806 = vst.msk [vmem:[%s265 + $0xf0] sm:$0xff] %vm775, %v773
      %807 = vst.msk [vmem:[%s265 + $0xf8] sm:$0xff] %vm775, %v774
      // Predicated region
      $region37: #{tpu_custom_call.1} parent=31 // pred_check
        %p808 = pneg %p268
      $region38: #{tpu_custom_call.1} parent=31 // pred_check_branch
        %810 = sbr.rel (%p808) target = $region40
      $region39: #{tpu_custom_call.1} parent=31 // pred_region
        %v811 = vld [vmem:[%s265] sm:$0xff]
        %v812 = vld [vmem:[%s265 + $0x8] sm:$0xff]
        %v813 = vld [vmem:[%s265 + $0x10] sm:$0xff]
        %v814 = vld [vmem:[%s265 + $0x18] sm:$0xff]
        %v815 = vld [vmem:[%s265 + $0x20] sm:$0xff]
        %v816 = vld [vmem:[%s265 + $0x28] sm:$0xff]
        %v817 = vld [vmem:[%s265 + $0x30] sm:$0xff]
        %v818 = vld [vmem:[%s265 + $0x38] sm:$0xff]
        %v819 = vld [vmem:[%s265 + $0x40] sm:$0xff]
        %v820 = vld [vmem:[%s265 + $0x48] sm:$0xff]
        %v821 = vld [vmem:[%s265 + $0x50] sm:$0xff]
        %v822 = vld [vmem:[%s265 + $0x58] sm:$0xff]
        %v823 = vld [vmem:[%s265 + $0x60] sm:$0xff]
        %v824 = vld [vmem:[%s265 + $0x68] sm:$0xff]
        %v825 = vld [vmem:[%s265 + $0x70] sm:$0xff]
        %v826 = vld [vmem:[%s265 + $0x78] sm:$0xff]
        %v827 = vld [vmem:[%s265 + $0x80] sm:$0xff]
        %v828 = vld [vmem:[%s265 + $0x88] sm:$0xff]
        %v829 = vld [vmem:[%s265 + $0x90] sm:$0xff]
        %v830 = vld [vmem:[%s265 + $0x98] sm:$0xff]
        %v831 = vld [vmem:[%s265 + $0xa0] sm:$0xff]
        %v832 = vld [vmem:[%s265 + $0xa8] sm:$0xff]
        %v833 = vld [vmem:[%s265 + $0xb0] sm:$0xff]
        %v834 = vld [vmem:[%s265 + $0xb8] sm:$0xff]
        %v835 = vld [vmem:[%s265 + $0xc0] sm:$0xff]
        %v836 = vld [vmem:[%s265 + $0xc8] sm:$0xff]
        %v837 = vld [vmem:[%s265 + $0xd0] sm:$0xff]
        %v838 = vld [vmem:[%s265 + $0xd8] sm:$0xff]
        %v839 = vld [vmem:[%s265 + $0xe0] sm:$0xff]
        %v840 = vld [vmem:[%s265 + $0xe8] sm:$0xff]
        %v841 = vld [vmem:[%s265 + $0xf0] sm:$0xff]
        %v842 = vld [vmem:[%s265 + $0xf8] sm:$0xff]
        %v843 = vld [vmem:[%s257] sm:$0x1]
        %v845 = vperm.slane %v843, 0
        %v847 = vadd.f32 %v811, %v845
        %v848 = vadd.f32 %v812, %v845
        %v849 = vadd.f32 %v813, %v845
        %v850 = vadd.f32 %v814, %v845
        %v851 = vadd.f32 %v815, %v845
        %v852 = vadd.f32 %v816, %v845
        %v853 = vadd.f32 %v817, %v845
        %v854 = vadd.f32 %v818, %v845
        %v855 = vadd.f32 %v819, %v845
        %v856 = vadd.f32 %v820, %v845
        %v857 = vadd.f32 %v821, %v845
        %v858 = vadd.f32 %v822, %v845
        %v859 = vadd.f32 %v823, %v845
        %v860 = vadd.f32 %v824, %v845
        %v861 = vadd.f32 %v825, %v845
        %v862 = vadd.f32 %v826, %v845
        %v863 = vadd.f32 %v827, %v845
        %v864 = vadd.f32 %v828, %v845
        %v865 = vadd.f32 %v829, %v845
        %v866 = vadd.f32 %v830, %v845
        %v867 = vadd.f32 %v831, %v845
        %v868 = vadd.f32 %v832, %v845
        %v869 = vadd.f32 %v833, %v845
        %v870 = vadd.f32 %v834, %v845
        %v871 = vadd.f32 %v835, %v845
        %v872 = vadd.f32 %v836, %v845
        %v873 = vadd.f32 %v837, %v845
        %v874 = vadd.f32 %v838, %v845
        %v875 = vadd.f32 %v839, %v845
        %v876 = vadd.f32 %v840, %v845
        %v877 = vadd.f32 %v841, %v845
        %v878 = vadd.f32 %v842, %v845
        %v879 = vmax.f32 %v847, 0.0
        %v880 = vmax.f32 %v848, 0.0
        %v881 = vmax.f32 %v849, 0.0
        %v882 = vmax.f32 %v850, 0.0
        %v883 = vmax.f32 %v851, 0.0
        %v884 = vmax.f32 %v852, 0.0
        %v885 = vmax.f32 %v853, 0.0
        %v886 = vmax.f32 %v854, 0.0
        %v887 = vmax.f32 %v855, 0.0
        %v888 = vmax.f32 %v856, 0.0
        %v889 = vmax.f32 %v857, 0.0
        %v890 = vmax.f32 %v858, 0.0
        %v891 = vmax.f32 %v859, 0.0
        %v892 = vmax.f32 %v860, 0.0
        %v893 = vmax.f32 %v861, 0.0
        %v894 = vmax.f32 %v862, 0.0
        %v895 = vmax.f32 %v863, 0.0
        %v896 = vmax.f32 %v864, 0.0
        %v897 = vmax.f32 %v865, 0.0
        %v898 = vmax.f32 %v866, 0.0
        %v899 = vmax.f32 %v867, 0.0
        %v900 = vmax.f32 %v868, 0.0
        %v901 = vmax.f32 %v869, 0.0
        %v902 = vmax.f32 %v870, 0.0
        %v903 = vmax.f32 %v871, 0.0
        %v904 = vmax.f32 %v872, 0.0
        %v905 = vmax.f32 %v873, 0.0
        %v906 = vmax.f32 %v874, 0.0
        %v907 = vmax.f32 %v875, 0.0
        %v908 = vmax.f32 %v876, 0.0
        %v909 = vmax.f32 %v877, 0.0
        %v910 = vmax.f32 %v878, 0.0
        %911 = vst.msk [vmem:[%s265] sm:$0xff] %vm775, %v879
        %912 = vst.msk [vmem:[%s265 + $0x8] sm:$0xff] %vm775, %v880
        %913 = vst.msk [vmem:[%s265 + $0x10] sm:$0xff] %vm775, %v881
        %914 = vst.msk [vmem:[%s265 + $0x18] sm:$0xff] %vm775, %v882
        %915 = vst.msk [vmem:[%s265 + $0x20] sm:$0xff] %vm775, %v883
        %916 = vst.msk [vmem:[%s265 + $0x28] sm:$0xff] %vm775, %v884
        %917 = vst.msk [vmem:[%s265 + $0x30] sm:$0xff] %vm775, %v885
        %918 = vst.msk [vmem:[%s265 + $0x38] sm:$0xff] %vm775, %v886
        %919 = vst.msk [vmem:[%s265 + $0x40] sm:$0xff] %vm775, %v887
        %920 = vst.msk [vmem:[%s265 + $0x48] sm:$0xff] %vm775, %v888
        %921 = vst.msk [vmem:[%s265 + $0x50] sm:$0xff] %vm775, %v889
        %922 = vst.msk [vmem:[%s265 + $0x58] sm:$0xff] %vm775, %v890
        %923 = vst.msk [vmem:[%s265 + $0x60] sm:$0xff] %vm775, %v891
        %924 = vst.msk [vmem:[%s265 + $0x68] sm:$0xff] %vm775, %v892
        %925 = vst.msk [vmem:[%s265 + $0x70] sm:$0xff] %vm775, %v893
        %926 = vst.msk [vmem:[%s265 + $0x78] sm:$0xff] %vm775, %v894
        %927 = vst.msk [vmem:[%s265 + $0x80] sm:$0xff] %vm775, %v895
        %928 = vst.msk [vmem:[%s265 + $0x88] sm:$0xff] %vm775, %v896
        %929 = vst.msk [vmem:[%s265 + $0x90] sm:$0xff] %vm775, %v897
        %930 = vst.msk [vmem:[%s265 + $0x98] sm:$0xff] %vm775, %v898
        %931 = vst.msk [vmem:[%s265 + $0xa0] sm:$0xff] %vm775, %v899
        %932 = vst.msk [vmem:[%s265 + $0xa8] sm:$0xff] %vm775, %v900
        %933 = vst.msk [vmem:[%s265 + $0xb0] sm:$0xff] %vm775, %v901
        %934 = vst.msk [vmem:[%s265 + $0xb8] sm:$0xff] %vm775, %v902
        %935 = vst.msk [vmem:[%s265 + $0xc0] sm:$0xff] %vm775, %v903
        %936 = vst.msk [vmem:[%s265 + $0xc8] sm:$0xff] %vm775, %v904
        %937 = vst.msk [vmem:[%s265 + $0xd0] sm:$0xff] %vm775, %v905
        %938 = vst.msk [vmem:[%s265 + $0xd8] sm:$0xff] %vm775, %v906
        %939 = vst.msk [vmem:[%s265 + $0xe0] sm:$0xff] %vm775, %v907
        %940 = vst.msk [vmem:[%s265 + $0xe8] sm:$0xff] %vm775, %v908
        %941 = vst.msk [vmem:[%s265 + $0xf0] sm:$0xff] %vm775, %v909
        %942 = vst.msk [vmem:[%s265 + $0xf8] sm:$0xff] %vm775, %v910
      $region40: #{tpu_custom_call.1} parent=31 // pred_fallthru
        _
      %s943 = smul.u32 32, %s19
      %p944 = scmp.lt.s32.totalorder %s943, 63
      %s945 = scalar_select %p944, %s943, 63
      %p946 = scmp.lt.s32.totalorder %s20, 0
      %s947 = scalar_select %p946, %s20, 0
      %s948 = sadd.s32 %s947, %s945
      %s949 = smul.addr %s948, 8
      %s950 = scalar_lea.vmem %s3, %s949
      // Predicated region
      $region41: #{tpu_custom_call.1} parent=31 // pred_check
        %p951 = pneg %p135
      $region42: #{tpu_custom_call.1} parent=31 // pred_check_branch
        %953 = sbr.rel (%p951) target = $region44
      $region43: #{tpu_custom_call.1} parent=31 // pred_region
        %s954 = smul.u32 32, %s19
      $region44: #{tpu_custom_call.1} parent=31 // pred_fallthru
        _
    $region32: #{tpu_custom_call.1} parent=5 // pred_fallthru
      _
    %p955 = scmp.le.s32.totalorder 2, %s9
    // Predicated region
    $region45: #{tpu_custom_call.1} parent=5 // pred_check
      %p956 = pneg %p955
    $region46: #{tpu_custom_call.1} parent=5 // pred_check_branch
      %958 = sbr.rel (%p956) target = $region48
    $region47: #{tpu_custom_call.1} parent=5 // pred_region
      %s959 = ssub.s32 %s9, 2
      // Predicated region
      $region49: #{tpu_custom_call.1} parent=47 // pred_check
        %p960 = pneg %p141
      $region50: #{tpu_custom_call.1} parent=47 // pred_check_branch
        %962 = sbr.rel (%p960) target = $region52
      $region51: #{tpu_custom_call.1} parent=47 // pred_region
        %s963 = smul.u32 32, %s22
        %p964 = scmp.lt.s32.totalorder %s963, 63
        %s965 = scalar_select %p964, %s963, 63
        %p966 = scmp.lt.s32.totalorder %s23, 0
        %s967 = scalar_select %p966, %s23, 0
        %s968 = sadd.s32 %s967, %s965
        %s969 = smul.addr %s968, 8
        %s970 = scalar_lea.vmem %s3, %s969
      $region52: #{tpu_custom_call.1} parent=47 // pred_fallthru
        _
    $region48: #{tpu_custom_call.1} parent=5 // pred_fallthru
      _
  $region6: #{tpu_custom_call.1} parent=0 // loop_footer
    %s13 = sadd.s32 1, %s9
  $region7: #{tpu_custom_call.1} parent=0 // loop_footer_branch
    %8 = sbr.rel target = $region3
  $region8: #{tpu_custom_call.1} parent=0 // loop_exit
    _

</llo_original>
